<compile_context>
chip_gen: v7x
topology: tpu7x:2x2x1
jax: 0.10.0
libtpu: 0.0.40
codegen_flags: <defaults>
</compile_context>

<pallas_src>
import functools

import jax
import jax.numpy as jnp
from jax.experimental import pallas as pl
from jax.experimental.pallas import tpu as pltpu

IN_DIM = 68 * 2        # 136 — natural recon width (no 256-lane padding anymore)
HIDDEN = 100
H_PAD = 128            # hidden padded to lane width
LAT_HALF = 64          # packed latent tile: mu in lanes [0:64), var in [64:128)
MAX_TB = 512           # batch-tile cap (fits v5e's 16 MiB scoped-VMEM default)


def _leaky_relu(v, slope=0.01):
    return jnp.where(v > 0, v, slope * v)


def landmark_vae_kernel(
    x_ref, eps_ref,
    we_ref, be_ref,
    w12_ref, b12_ref,
    wd1_ref, bd1_ref,
    wd2_ref, bd2_ref,
    recon_ref, muvar_ref,
    *, latent_dim,
):
    mxu_dtype = we_ref.dtype   # weights were pre-cast once in pack_params

    def mm(a, w_ref):
        return jnp.dot(a.astype(mxu_dtype), w_ref[...],
                       preferred_element_type=jnp.float32)

    x = x_ref[...]

    # encoder: Linear(136 -> 100, lane-padded to 128) + LeakyReLU
    h = _leaky_relu(mm(x, we_ref) + be_ref[...])          # (TB, 128); cols 100: are exact 0

    # fused fc1 || fc2: one Linear(128 -> 128) + LeakyReLU.
    # lanes [0:L) = mu, lanes [64:64+L) = var, everything else exact 0.
    y = _leaky_relu(mm(h, w12_ref) + b12_ref[...])        # (TB, 128)
    muvar_ref[...] = y                                    # single 128-lane-dense store

    # reparametrize at natural latent width L (no padded eps, no exp on dead lanes)
    mu = y[:, :latent_dim]
    var = pltpu.roll(y, shift=LAT_HALF, axis=1)[:, :latent_dim]   # lanes [64:64+L) -> [0:L)
    z = eps_ref[...] * jnp.exp(0.5 * var) + mu            # (TB, L)

    # decoder: Linear(L -> 100, padded to 128) + LeakyReLU, Linear(128 -> 136) + Sigmoid
    d = _leaky_relu(mm(z, wd1_ref) + bd1_ref[...])        # (TB, 128); cols 100: exact 0
    logits = mm(d, wd2_ref) + bd2_ref[...]                # (TB, 136) natural width
    recon_ref[...] = jax.nn.sigmoid(logits)


def pack_params(params, latent_dim, *, weight_dtype=jnp.float32):
    """Zero-pad / fuse the PyTorch-layout params into lane-aligned slabs.

    Weights are cast to `weight_dtype` once here (bf16 for v6e/v7x MXU); biases
    stay f32 because they are added to the f32 matmul accumulators.
    """
    L = latent_dim
    # TODO(synk): latent_dim > 64 would need a 256-lane packed mu||var tile.
    assert L <= LAT_HALF, "packed latent layout requires latent_dim <= 64"

    def padw(a, rows, cols):
        a = jnp.asarray(a, jnp.float32)
        a = jnp.pad(a, ((0, rows - a.shape[0]), (0, cols - a.shape[1])))
        return a.astype(weight_dtype)

    def padb(a, cols):
        a = jnp.asarray(a, jnp.float32).reshape(1, -1)
        return jnp.pad(a, ((0, 0), (0, cols - a.shape[1])))

    we = padw(params["we"], IN_DIM, H_PAD)
    be = padb(params["be"], H_PAD)

    # fused fc1 || fc2: cols [0:L) = W1, cols [64:64+L) = W2, rest exact 0
    w12 = jnp.zeros((H_PAD, 2 * LAT_HALF), jnp.float32)
    w12 = w12.at[:HIDDEN, :L].set(jnp.asarray(params["w1"], jnp.float32))
    w12 = w12.at[:HIDDEN, LAT_HALF:LAT_HALF + L].set(jnp.asarray(params["w2"], jnp.float32))
    w12 = w12.astype(weight_dtype)
    b12 = jnp.zeros((1, 2 * LAT_HALF), jnp.float32)
    b12 = b12.at[:, :L].set(jnp.asarray(params["b1"], jnp.float32).reshape(1, -1))
    b12 = b12.at[:, LAT_HALF:LAT_HALF + L].set(
        jnp.asarray(params["b2"], jnp.float32).reshape(1, -1))

    wd1 = padw(params["wd1"], L, H_PAD)       # (L, 128); cols 100:128 zero, no row pad
    bd1 = padb(params["bd1"], H_PAD)
    wd2 = padw(params["wd2"], H_PAD, IN_DIM)  # (128, 136); rows 100:128 zero, no col pad
    bd2 = padb(params["bd2"], IN_DIM)

    return {"we": we, "be": be, "w12": w12, "b12": b12,
            "wd1": wd1, "bd1": bd1, "wd2": wd2, "bd2": bd2}


def _choose_batch_tile(B):
    if B <= 16:
        return B
    # Split the batch across >= 2 grid steps so v7x's 2nd TensorCore gets work;
    # cap at 512 rows to stay well within v5e's 16 MiB scoped-VMEM default.
    half = (B + 1) // 2
    return min(MAX_TB, ((half + 7) // 8) * 8)


@functools.partial(jax.jit, static_argnames=("latent_dim", "use_bf16"))
def landmark_vae_forward(x, eps, packed, latent_dim, use_bf16=False):
    B = x.shape[0]
    L = latent_dim
    assert eps.shape == (B, L)

    x = jnp.asarray(x, jnp.bfloat16 if use_bf16 else jnp.float32)
    eps = jnp.asarray(eps, jnp.float32)

    TB = _choose_batch_tile(B)
    Bp = ((B + TB - 1) // TB) * TB
    if Bp != B:
        # TODO(synk): for huge batches pick TB dividing B; this pad is an extra HBM pass.
        x = jnp.pad(x, ((0, Bp - B), (0, 0)))
        eps = jnp.pad(eps, ((0, Bp - B), (0, 0)))
    grid = (Bp // TB,)

    def stream(width):                       # batch-tiled, streamed through VMEM
        return pl.BlockSpec((TB, width), lambda i: (i, 0))

    def resident(shape):                     # same block every step -> VMEM-resident
        return pl.BlockSpec(shape, lambda i: (0, 0))

    in_specs = [
        stream(IN_DIM),                      # x
        stream(L),                           # eps at natural latent width
        resident((IN_DIM, H_PAD)),           # we
        resident((1, H_PAD)),                # be
        resident((H_PAD, 2 * LAT_HALF)),     # w12 (fused fc1 || fc2)
        resident((1, 2 * LAT_HALF)),         # b12
        resident((L, H_PAD)),                # wd1
        resident((1, H_PAD)),                # bd1
        resident((H_PAD, IN_DIM)),           # wd2
        resident((1, IN_DIM)),               # bd2
    ]
    out_specs = (stream(IN_DIM), stream(2 * LAT_HALF))
    out_shape = (
        jax.ShapeDtypeStruct((Bp, IN_DIM), jnp.float32),        # recon, natural 136 lanes
        jax.ShapeDtypeStruct((Bp, 2 * LAT_HALF), jnp.float32),  # mu||var packed, 128 lanes
    )

    weight_bytes = sum(int(v.size) * v.dtype.itemsize for v in packed.values())
    cost = pl.CostEstimate(
        flops=2 * Bp * (IN_DIM * H_PAD + H_PAD * 2 * LAT_HALF + L * H_PAD + H_PAD * IN_DIM),
        transcendentals=Bp * (L + IN_DIM),
        bytes_accessed=int(Bp * IN_DIM * x.dtype.itemsize + Bp * L * 4 + weight_bytes
                           + Bp * (IN_DIM + 2 * LAT_HALF) * 4),
    )

    recon_p, muvar_p = pl.pallas_call(
        functools.partial(landmark_vae_kernel, latent_dim=L),
        grid=grid,
        in_specs=in_specs,
        out_specs=out_specs,
        out_shape=out_shape,
        compiler_params=pltpu.CompilerParams(dimension_semantics=("parallel",)),
        cost_estimate=cost,
    )(x, eps, packed["we"], packed["be"], packed["w12"], packed["b12"],
      packed["wd1"], packed["bd1"], packed["wd2"], packed["bd2"])

    # recon already has its natural width; only a (possible) batch un-pad remains.
    recon = recon_p if Bp == B else recon_p[:B]
    # Perf-sensitive consumers can use the packed mu||var slab directly
    # (mu in lanes [0:L), var in lanes [64:64+L)); this small unpack exists only
    # to match the PyTorch module's return signature.
    mu = muvar_p[:B, :L]
    var = muvar_p[:B, LAT_HALF:LAT_HALF + L]
    return recon, mu, var


def init_params(key, latent_dim):
    """Deterministic synthetic parameters (PyTorch Linear shapes, pre-transposed)."""
    ks = jax.random.split(key, 10)

    def lin(kw, kb, fan_in, fan_out):
        bound = 1.0 / jnp.sqrt(fan_in)
        w = jax.random.uniform(kw, (fan_in, fan_out), jnp.float32, -bound, bound)
        b = jax.random.uniform(kb, (1, fan_out), jnp.float32, -bound, bound)
        return w, b

    we, be = lin(ks[0], ks[1], IN_DIM, HIDDEN)
    w1, b1 = lin(ks[2], ks[3], HIDDEN, latent_dim)
    w2, b2 = lin(ks[4], ks[5], HIDDEN, latent_dim)
    wd1, bd1 = lin(ks[6], ks[7], latent_dim, HIDDEN)
    wd2, bd2 = lin(ks[8], ks[9], HIDDEN, IN_DIM)
    return {"we": we, "be": be, "w1": w1, "b1": b1, "w2": w2, "b2": b2,
            "wd1": wd1, "bd1": bd1, "wd2": wd2, "bd2": bd2}


def reference_forward(x, eps, params):
    leaky = lambda v: jnp.where(v > 0, v, 0.01 * v)
    h = leaky(x @ params["we"] + params["be"])
    mu = leaky(h @ params["w1"] + params["b1"])
    var = leaky(h @ params["w2"] + params["b2"])
    z = eps * jnp.exp(0.5 * var) + mu
    d = leaky(z @ params["wd1"] + params["bd1"])
    recon = jax.nn.sigmoid(d @ params["wd2"] + params["bd2"])
    return recon, mu, var


if __name__ == "__main__":
    LATENT_DIM = 16

    key = jax.random.PRNGKey(0)
    k_x, k_eps, k_params = jax.random.split(key, 3)
    params = init_params(k_params, LATENT_DIM)
    packed_f32 = pack_params(params, LATENT_DIM)

    # --- small batch, single grid step, f32 path (bit-matches reference math) ---
    B = 8
    x = jax.random.uniform(k_x, (B, IN_DIM), jnp.float32)           # 68 2-D landmarks
    eps = jax.random.normal(k_eps, (B, LATENT_DIM), jnp.float32)    # external N(0,1) noise
    recon, mu, var = landmark_vae_forward(x, eps, packed_f32, latent_dim=LATENT_DIM)
    jax.block_until_ready((recon, mu, var))

    r_ref, m_ref, v_ref = reference_forward(x, eps, params)
    assert recon.shape == (B, IN_DIM)
    assert mu.shape == (B, LATENT_DIM) and var.shape == (B, LATENT_DIM)
    assert jnp.allclose(recon, r_ref, atol=1e-5)
    assert jnp.allclose(mu, m_ref, atol=1e-5)
    assert jnp.allclose(var, v_ref, atol=1e-5)

    # --- multi-step grid + remainder batch-padding path ---
    B2 = 40
    x2 = jax.random.uniform(jax.random.fold_in(k_x, 1), (B2, IN_DIM), jnp.float32)
    eps2 = jax.random.normal(jax.random.fold_in(k_eps, 1), (B2, LATENT_DIM), jnp.float32)
    recon2, mu2, var2 = landmark_vae_forward(x2, eps2, packed_f32, latent_dim=LATENT_DIM)
    jax.block_until_ready((recon2, mu2, var2))
    r2, m2, v2 = reference_forward(x2, eps2, params)
    assert jnp.allclose(recon2, r2, atol=1e-5)
    assert jnp.allclose(mu2, m2, atol=1e-5)
    assert jnp.allclose(var2, v2, atol=1e-5)

    # --- bf16 MXU path (v6e/v7x): weights pre-cast once; looser tolerance expected ---
    packed_bf16 = pack_params(params, LATENT_DIM, weight_dtype=jnp.bfloat16)
    recon_b, mu_b, var_b = landmark_vae_forward(
        x, eps, packed_bf16, latent_dim=LATENT_DIM, use_bf16=True)
    jax.block_until_ready((recon_b, mu_b, var_b))
    assert jnp.allclose(recon_b, r_ref, rtol=3e-2, atol=3e-2)
    assert jnp.allclose(mu_b, m_ref, rtol=3e-2, atol=3e-2)
    assert jnp.allclose(var_b, v_ref, rtol=3e-2, atol=3e-2)

    print("KERNEL_OK")
</pallas_src>

<mosaic_0001>
module attributes {stable_mosaic.version = 11 : i64} {
  func.func @landmark_vae_kernel(%arg0: i32, %arg1: memref<8x136xf32, #tpu.memory_space<vmem>>, %arg2: memref<8x16xf32, #tpu.memory_space<vmem>>, %arg3: memref<136x128xf32, #tpu.memory_space<vmem>>, %arg4: memref<1x128xf32, #tpu.memory_space<vmem>>, %arg5: memref<128x128xf32, #tpu.memory_space<vmem>>, %arg6: memref<1x128xf32, #tpu.memory_space<vmem>>, %arg7: memref<16x128xf32, #tpu.memory_space<vmem>>, %arg8: memref<1x128xf32, #tpu.memory_space<vmem>>, %arg9: memref<128x136xf32, #tpu.memory_space<vmem>>, %arg10: memref<1x136xf32, #tpu.memory_space<vmem>>, %arg11: memref<8x136xf32, #tpu.memory_space<vmem>>, %arg12: memref<8x128xf32, #tpu.memory_space<vmem>>) attributes {dimension_semantics = [#tpu.dimension_semantics<parallel>], iteration_bounds = array<i64: 1>, scalar_prefetch = 0 : i64, scratch_operands = 0 : i64, tpu.core_type = #tpu.core_type<tc>, window_params = [{transform_indices = @transform_0, window_bounds = array<i64: 8, 136>}, {transform_indices = @transform_1, window_bounds = array<i64: 8, 16>}, {pipeline_mode = #tpu.pipeline_mode<synchronous>, transform_indices = @transform_2, window_bounds = array<i64: 136, 128>}, {pipeline_mode = #tpu.pipeline_mode<synchronous>, transform_indices = @transform_3, window_bounds = array<i64: 1, 128>}, {pipeline_mode = #tpu.pipeline_mode<synchronous>, transform_indices = @transform_4, window_bounds = array<i64: 128, 128>}, {pipeline_mode = #tpu.pipeline_mode<synchronous>, transform_indices = @transform_5, window_bounds = array<i64: 1, 128>}, {pipeline_mode = #tpu.pipeline_mode<synchronous>, transform_indices = @transform_6, window_bounds = array<i64: 16, 128>}, {pipeline_mode = #tpu.pipeline_mode<synchronous>, transform_indices = @transform_7, window_bounds = array<i64: 1, 128>}, {pipeline_mode = #tpu.pipeline_mode<synchronous>, transform_indices = @transform_8, window_bounds = array<i64: 128, 136>}, {pipeline_mode = #tpu.pipeline_mode<synchronous>, transform_indices = @transform_9, window_bounds = array<i64: 1, 136>}, {transform_indices = @transform_10, window_bounds = array<i64: 8, 136>}, {transform_indices = @transform_11, window_bounds = array<i64: 8, 128>}]} {
    %c0 = arith.constant 0 : index
    %c0_0 = arith.constant 0 : index
    %0 = vector.load %arg1[%c0, %c0_0] : memref<8x136xf32, #tpu.memory_space<vmem>>, vector<8x136xf32>
    %c0_1 = arith.constant 0 : index
    %c0_2 = arith.constant 0 : index
    %1 = vector.load %arg3[%c0_1, %c0_2] : memref<136x128xf32, #tpu.memory_space<vmem>>, vector<136x128xf32>
    %cst = arith.constant dense<0.000000e+00> : vector<8x128xf32>
    %2 = tpu.matmul %0, %1, %cst {dimension_numbers = #tpu.dot_dimension_numbers<[1], [0], [0], [1], [0, 0, 1, 1], [], []>} : vector<8x136xf32>, vector<136x128xf32>, vector<8x128xf32> -> vector<8x128xf32>
    %c0_3 = arith.constant 0 : index
    %c0_4 = arith.constant 0 : index
    %3 = vector.load %arg4[%c0_3, %c0_4] : memref<1x128xf32, #tpu.memory_space<vmem>>, vector<1x128xf32>
    %4 = vector.broadcast %3 : vector<1x128xf32> to vector<8x128xf32>
    %5 = arith.addf %2, %4 : vector<8x128xf32>
    %cst_5 = arith.constant 0.000000e+00 : f32
    %6 = vector.broadcast %cst_5 : f32 to vector<8x128xf32>
    %7 = arith.cmpf ogt, %5, %6 : vector<8x128xf32>
    %cst_6 = arith.constant 0.00999999977 : f32
    %8 = vector.broadcast %cst_6 : f32 to vector<8x128xf32>
    %9 = arith.mulf %8, %5 : vector<8x128xf32>
    %10 = arith.select %7, %5, %9 : vector<8x128xi1>, vector<8x128xf32>
    %c0_7 = arith.constant 0 : index
    %c0_8 = arith.constant 0 : index
    %11 = vector.load %arg5[%c0_7, %c0_8] : memref<128x128xf32, #tpu.memory_space<vmem>>, vector<128x128xf32>
    %cst_9 = arith.constant dense<0.000000e+00> : vector<8x128xf32>
    %12 = tpu.matmul %10, %11, %cst_9 {dimension_numbers = #tpu.dot_dimension_numbers<[1], [0], [0], [1], [0, 0, 1, 1], [], []>} : vector<8x128xf32>, vector<128x128xf32>, vector<8x128xf32> -> vector<8x128xf32>
    %c0_10 = arith.constant 0 : index
    %c0_11 = arith.constant 0 : index
    %13 = vector.load %arg6[%c0_10, %c0_11] : memref<1x128xf32, #tpu.memory_space<vmem>>, vector<1x128xf32>
    %14 = vector.broadcast %13 : vector<1x128xf32> to vector<8x128xf32>
    %15 = arith.addf %12, %14 : vector<8x128xf32>
    %cst_12 = arith.constant 0.000000e+00 : f32
    %16 = vector.broadcast %cst_12 : f32 to vector<8x128xf32>
    %17 = arith.cmpf ogt, %15, %16 : vector<8x128xf32>
    %cst_13 = arith.constant 0.00999999977 : f32
    %18 = vector.broadcast %cst_13 : f32 to vector<8x128xf32>
    %19 = arith.mulf %18, %15 : vector<8x128xf32>
    %20 = arith.select %17, %15, %19 : vector<8x128xi1>, vector<8x128xf32>
    %c0_14 = arith.constant 0 : index
    %c0_15 = arith.constant 0 : index
    %21 = vector.load %arg12[%c0_14, %c0_15] : memref<8x128xf32, #tpu.memory_space<vmem>>, vector<8x128xf32>
    tpu.vector_store %arg12[%c0_14, %c0_15], %20 {strides = array<i32>} : memref<8x128xf32, #tpu.memory_space<vmem>>, vector<8x128xf32>,
    %22 = vector.extract_strided_slice %20 {offsets = [0, 0], sizes = [8, 16], strides = [1, 1]} : vector<8x128xf32> to vector<8x16xf32>
    %c64_i32 = arith.constant 64 : i32
    %23 = tpu.dynamic_rotate %20 by %c64_i32 dim 1 : vector<8x128xf32>, i32 -> vector<8x128xf32>
    %24 = vector.extract_strided_slice %23 {offsets = [0, 0], sizes = [8, 16], strides = [1, 1]} : vector<8x128xf32> to vector<8x16xf32>
    %c0_16 = arith.constant 0 : index
    %c0_17 = arith.constant 0 : index
    %25 = vector.load %arg2[%c0_16, %c0_17] : memref<8x16xf32, #tpu.memory_space<vmem>>, vector<8x16xf32>
    %cst_18 = arith.constant 5.000000e-01 : f32
    %26 = vector.broadcast %cst_18 : f32 to vector<8x16xf32>
    %27 = arith.mulf %26, %24 : vector<8x16xf32>
    %28 = math.exp %27 : vector<8x16xf32>
    %29 = arith.mulf %25, %28 : vector<8x16xf32>
    %30 = arith.addf %29, %22 : vector<8x16xf32>
    %c0_19 = arith.constant 0 : index
    %c0_20 = arith.constant 0 : index
    %31 = vector.load %arg7[%c0_19, %c0_20] : memref<16x128xf32, #tpu.memory_space<vmem>>, vector<16x128xf32>
    %cst_21 = arith.constant dense<0.000000e+00> : vector<8x128xf32>
    %32 = tpu.matmul %30, %31, %cst_21 {dimension_numbers = #tpu.dot_dimension_numbers<[1], [0], [0], [1], [0, 0, 1, 1], [], []>} : vector<8x16xf32>, vector<16x128xf32>, vector<8x128xf32> -> vector<8x128xf32>
    %c0_22 = arith.constant 0 : index
    %c0_23 = arith.constant 0 : index
    %33 = vector.load %arg8[%c0_22, %c0_23] : memref<1x128xf32, #tpu.memory_space<vmem>>, vector<1x128xf32>
    %34 = vector.broadcast %33 : vector<1x128xf32> to vector<8x128xf32>
    %35 = arith.addf %32, %34 : vector<8x128xf32>
    %cst_24 = arith.constant 0.000000e+00 : f32
    %36 = vector.broadcast %cst_24 : f32 to vector<8x128xf32>
    %37 = arith.cmpf ogt, %35, %36 : vector<8x128xf32>
    %cst_25 = arith.constant 0.00999999977 : f32
    %38 = vector.broadcast %cst_25 : f32 to vector<8x128xf32>
    %39 = arith.mulf %38, %35 : vector<8x128xf32>
    %40 = arith.select %37, %35, %39 : vector<8x128xi1>, vector<8x128xf32>
    %c0_26 = arith.constant 0 : index
    %c0_27 = arith.constant 0 : index
    %41 = vector.load %arg9[%c0_26, %c0_27] : memref<128x136xf32, #tpu.memory_space<vmem>>, vector<128x136xf32>
    %cst_28 = arith.constant dense<0.000000e+00> : vector<8x136xf32>
    %42 = tpu.matmul %40, %41, %cst_28 {dimension_numbers = #tpu.dot_dimension_numbers<[1], [0], [0], [1], [0, 0, 1, 1], [], []>} : vector<8x128xf32>, vector<128x136xf32>, vector<8x136xf32> -> vector<8x136xf32>
    %c0_29 = arith.constant 0 : index
    %c0_30 = arith.constant 0 : index
    %43 = vector.load %arg10[%c0_29, %c0_30] : memref<1x136xf32, #tpu.memory_space<vmem>>, vector<1x136xf32>
    %44 = vector.broadcast %43 : vector<1x136xf32> to vector<8x136xf32>
    %45 = arith.addf %42, %44 : vector<8x136xf32>
    %46 = arith.negf %45 : vector<8x136xf32>
    %47 = math.exp %46 : vector<8x136xf32>
    %cst_31 = arith.constant 1.000000e+00 : f32
    %48 = vector.broadcast %cst_31 : f32 to vector<8x136xf32>
    %49 = arith.addf %48, %47 : vector<8x136xf32>
    %50 = arith.divf %48, %49 : vector<8x136xf32>
    %c0_32 = arith.constant 0 : index
    %c0_33 = arith.constant 0 : index
    %51 = vector.load %arg11[%c0_32, %c0_33] : memref<8x136xf32, #tpu.memory_space<vmem>>, vector<8x136xf32>
    tpu.vector_store %arg11[%c0_32, %c0_33], %50 {strides = array<i32>} : memref<8x136xf32, #tpu.memory_space<vmem>>, vector<8x136xf32>,
    return
  }
  func.func @transform_0(%arg0: i32) -> (i32, i32) {
    %c0_i32 = arith.constant 0 : i32
    %c0_i32_0 = arith.constant 0 : i32
    return %arg0, %c0_i32 : i32, i32
  }
  func.func @transform_1(%arg0: i32) -> (i32, i32) {
    %c0_i32 = arith.constant 0 : i32
    %c0_i32_0 = arith.constant 0 : i32
    return %arg0, %c0_i32 : i32, i32
  }
  func.func @transform_2(%arg0: i32) -> (i32, i32) {
    %c0_i32 = arith.constant 0 : i32
    %c0_i32_0 = arith.constant 0 : i32
    %c0_i32_1 = arith.constant 0 : i32
    return %c0_i32, %c0_i32_0 : i32, i32
  }
  func.func @transform_3(%arg0: i32) -> (i32, i32) {
    %c0_i32 = arith.constant 0 : i32
    %c0_i32_0 = arith.constant 0 : i32
    %c0_i32_1 = arith.constant 0 : i32
    return %c0_i32, %c0_i32_0 : i32, i32
  }
  func.func @transform_4(%arg0: i32) -> (i32, i32) {
    %c0_i32 = arith.constant 0 : i32
    %c0_i32_0 = arith.constant 0 : i32
    %c0_i32_1 = arith.constant 0 : i32
    return %c0_i32, %c0_i32_0 : i32, i32
  }
  func.func @transform_5(%arg0: i32) -> (i32, i32) {
    %c0_i32 = arith.constant 0 : i32
    %c0_i32_0 = arith.constant 0 : i32
    %c0_i32_1 = arith.constant 0 : i32
    return %c0_i32, %c0_i32_0 : i32, i32
  }
  func.func @transform_6(%arg0: i32) -> (i32, i32) {
    %c0_i32 = arith.constant 0 : i32
    %c0_i32_0 = arith.constant 0 : i32
    %c0_i32_1 = arith.constant 0 : i32
    return %c0_i32, %c0_i32_0 : i32, i32
  }
  func.func @transform_7(%arg0: i32) -> (i32, i32) {
    %c0_i32 = arith.constant 0 : i32
    %c0_i32_0 = arith.constant 0 : i32
    %c0_i32_1 = arith.constant 0 : i32
    return %c0_i32, %c0_i32_0 : i32, i32
  }
  func.func @transform_8(%arg0: i32) -> (i32, i32) {
    %c0_i32 = arith.constant 0 : i32
    %c0_i32_0 = arith.constant 0 : i32
    %c0_i32_1 = arith.constant 0 : i32
    return %c0_i32, %c0_i32_0 : i32, i32
  }
  func.func @transform_9(%arg0: i32) -> (i32, i32) {
    %c0_i32 = arith.constant 0 : i32
    %c0_i32_0 = arith.constant 0 : i32
    %c0_i32_1 = arith.constant 0 : i32
    return %c0_i32, %c0_i32_0 : i32, i32
  }
  func.func @transform_10(%arg0: i32) -> (i32, i32) {
    %c0_i32 = arith.constant 0 : i32
    %c0_i32_0 = arith.constant 0 : i32
    return %arg0, %c0_i32 : i32, i32
  }
  func.func @transform_11(%arg0: i32) -> (i32, i32) {
    %c0_i32 = arith.constant 0 : i32
    %c0_i32_0 = arith.constant 0 : i32
    return %arg0, %c0_i32 : i32, i32
  }
}

</mosaic_0001>

<llo_original>
// kernel: landmark_vae_forward.1
$region0: #{landmark_vae_forward.1}
  #allocation0 [shape = 'u32[]', space=smem, size = 0x4, offset = 0x4, fixed_abs, tag = 'smem constant byte address 0x4 - core index']
  #allocation1 [shape = 'u32[144,128]{1,0:T(1,128)}', space=vmem, size = 0x12000, scoped, tag = 'internal scratch']
  %s0 = inlined_call_operand.vmem [shape: f32[8,136], index: 0, kind: input, shape index: {}]
  %s1 = inlined_call_operand.vmem [shape: f32[8,16], index: 1, kind: input, shape index: {}]
  %s2 = inlined_call_operand.vmem [shape: f32[136,128], index: 2, kind: input, shape index: {}]
  %s3 = inlined_call_operand.vmem [shape: f32[1,128], index: 3, kind: input, shape index: {}]
  %s4 = inlined_call_operand.vmem [shape: f32[128,128], index: 4, kind: input, shape index: {}]
  %s5 = inlined_call_operand.vmem [shape: f32[1,128], index: 5, kind: input, shape index: {}]
  %s6 = inlined_call_operand.vmem [shape: f32[16,128], index: 6, kind: input, shape index: {}]
  %s7 = inlined_call_operand.vmem [shape: f32[1,128], index: 7, kind: input, shape index: {}]
  %s8 = inlined_call_operand.vmem [shape: f32[128,136], index: 8, kind: input, shape index: {}]
  %s9 = inlined_call_operand.vmem [shape: f32[1,136], index: 9, kind: input, shape index: {}]
  %s10 = inlined_call_operand.hbm [shape: f32[8,136], index: 10, kind: output, shape index: {0}]
  %s11 = inlined_call_operand.vmem [shape: f32[8,128], index: 11, kind: output, shape index: {1}]
  %12 = xla_tuple %s10, %s11
  %s13 = sld [smem:[#allocation0]]
  $region58: #{landmark_vae_forward.1} parent=0
    _
  %s15 = ssub.s32 1, %s13
  %s16 = scalar_select 0, %s15, %s13
  $region1: #{landmark_vae_forward.1} parent=0
    #allocation2 [shape = 'u8[8192]{0}', space=vmem, size = 0x2000, scoped, tag = 'output window, operand 0, single buffered']
    #allocation3 [shape = 's32[1]{0}', space=sflag, size = 0x4, scoped, tag = 'scoped memory for landmark_vae_forward.1']
    %17 = vsyncpa [#allocation3], 0
    // Predicated region
    $region2: #{landmark_vae_forward.1} parent=1 // pred_check
      _
    $region3: #{landmark_vae_forward.1} parent=1 // pred_check_branch
      %19 = sbr.rel (0) target = $region5
    $region4: #{landmark_vae_forward.1} parent=1 // pred_region
      _
    $region5: #{landmark_vae_forward.1} parent=1 // pred_fallthru
      _
    // Predicated region
    $region6: #{landmark_vae_forward.1} parent=1 // pred_check
      _
    $region7: #{landmark_vae_forward.1} parent=1 // pred_check_branch
      %21 = sbr.rel (0) target = $region9
    $region8: #{landmark_vae_forward.1} parent=1 // pred_region
      _
    $region9: #{landmark_vae_forward.1} parent=1 // pred_fallthru
      _
    // Predicated region
    $region10: #{landmark_vae_forward.1} parent=1 // pred_check
      _
    $region11: #{landmark_vae_forward.1} parent=1 // pred_check_branch
      %23 = sbr.rel (0) target = $region13
    $region12: #{landmark_vae_forward.1} parent=1 // pred_region
      _
    $region13: #{landmark_vae_forward.1} parent=1 // pred_fallthru
      _
    // Predicated region
    $region14: #{landmark_vae_forward.1} parent=1 // pred_check
      _
    $region15: #{landmark_vae_forward.1} parent=1 // pred_check_branch
      %25 = sbr.rel (0) target = $region17
    $region16: #{landmark_vae_forward.1} parent=1 // pred_region
      _
    $region17: #{landmark_vae_forward.1} parent=1 // pred_fallthru
      _
    // Predicated region
    $region18: #{landmark_vae_forward.1} parent=1 // pred_check
      _
    $region19: #{landmark_vae_forward.1} parent=1 // pred_check_branch
      %27 = sbr.rel (0) target = $region21
    $region20: #{landmark_vae_forward.1} parent=1 // pred_region
      _
    $region21: #{landmark_vae_forward.1} parent=1 // pred_fallthru
      _
    // Predicated region
    $region22: #{landmark_vae_forward.1} parent=1 // pred_check
      _
    $region23: #{landmark_vae_forward.1} parent=1 // pred_check_branch
      %29 = sbr.rel (0) target = $region25
    $region24: #{landmark_vae_forward.1} parent=1 // pred_region
      _
    $region25: #{landmark_vae_forward.1} parent=1 // pred_fallthru
      _
    // Predicated region
    $region26: #{landmark_vae_forward.1} parent=1 // pred_check
      _
    $region27: #{landmark_vae_forward.1} parent=1 // pred_check_branch
      %31 = sbr.rel (0) target = $region29
    $region28: #{landmark_vae_forward.1} parent=1 // pred_region
      _
    $region29: #{landmark_vae_forward.1} parent=1 // pred_fallthru
      _
    // Predicated region
    $region30: #{landmark_vae_forward.1} parent=1 // pred_check
      _
    $region31: #{landmark_vae_forward.1} parent=1 // pred_check_branch
      %33 = sbr.rel (0) target = $region33
    $region32: #{landmark_vae_forward.1} parent=1 // pred_region
      _
    $region33: #{landmark_vae_forward.1} parent=1 // pred_fallthru
      _
    // Predicated region
    $region34: #{landmark_vae_forward.1} parent=1 // pred_check
      _
    $region35: #{landmark_vae_forward.1} parent=1 // pred_check_branch
      %35 = sbr.rel (0) target = $region37
    $region36: #{landmark_vae_forward.1} parent=1 // pred_region
      _
    $region37: #{landmark_vae_forward.1} parent=1 // pred_fallthru
      _
    // Predicated region
    $region38: #{landmark_vae_forward.1} parent=1 // pred_check
      _
    $region39: #{landmark_vae_forward.1} parent=1 // pred_check_branch
      %37 = sbr.rel (0) target = $region41
    $region40: #{landmark_vae_forward.1} parent=1 // pred_region
      _
    $region41: #{landmark_vae_forward.1} parent=1 // pred_fallthru
      _
    %v38 = vld [vmem:[%s0] sm:$0xff]
    %v39 = vld [vmem:[%s0 + $0x8] sm:$0xff]
    %v40 = vld [vmem:[%s2] sm:$0xff]
    %v41 = vld [vmem:[%s2 + $0x8] sm:$0xff]
    %v42 = vld [vmem:[%s2 + $0x10] sm:$0xff]
    %v43 = vld [vmem:[%s2 + $0x18] sm:$0xff]
    %v44 = vld [vmem:[%s2 + $0x20] sm:$0xff]
    %v45 = vld [vmem:[%s2 + $0x28] sm:$0xff]
    %v46 = vld [vmem:[%s2 + $0x30] sm:$0xff]
    %v47 = vld [vmem:[%s2 + $0x38] sm:$0xff]
    %v48 = vld [vmem:[%s2 + $0x40] sm:$0xff]
    %v49 = vld [vmem:[%s2 + $0x48] sm:$0xff]
    %v50 = vld [vmem:[%s2 + $0x50] sm:$0xff]
    %v51 = vld [vmem:[%s2 + $0x58] sm:$0xff]
    %v52 = vld [vmem:[%s2 + $0x60] sm:$0xff]
    %v53 = vld [vmem:[%s2 + $0x68] sm:$0xff]
    %v54 = vld [vmem:[%s2 + $0x70] sm:$0xff]
    %v55 = vld [vmem:[%s2 + $0x78] sm:$0xff]
    %v56 = vld [vmem:[%s2 + $0x80] sm:$0xff]
    %v57 = vld [vmem:[%s3] sm:$0x1]
    %v59 = vlaneseq
    %v60 = vshrl.u32 %v59, 7
    %v61 = vsub.s32 0, %v60
    %v62 = vrot.slane %v57, %v61
    %vm64 = vcmask 64512
    %v66 = vsel %vm64, %v39, 0
    %68 = vmatprep.subr.mxu0 0.0
    %69 = vmatpush1.msra.mxu0 %v40
    %70 = vmatprep.subr.mxu0 0.0
    %71 = vmatpush1.msra.mxu0 %v41
    %72 = vmatprep.subr.mxu0 0.0
    %73 = vmatpush1.msra.mxu0 %v42
    %74 = vmatprep.subr.mxu0 0.0
    %75 = vmatpush1.msra.mxu0 %v43
    %76 = vmatprep.subr.mxu0 0.0
    %77 = vmatpush1.msra.mxu0 %v44
    %78 = vmatprep.subr.mxu0 0.0
    %79 = vmatpush1.msra.mxu0 %v45
    %80 = vmatprep.subr.mxu0 0.0
    %81 = vmatpush1.msra.mxu0 %v46
    %82 = vmatprep.subr.mxu0 0.0
    %83 = vmatpush1.msra.mxu0 %v47
    %84 = vmatprep.subr.mxu0 0.0
    %85 = vmatpush1.msra.mxu0 %v48
    %86 = vmatprep.subr.mxu0 0.0
    %87 = vmatpush1.msra.mxu0 %v49
    %88 = vmatprep.subr.mxu0 0.0
    %89 = vmatpush1.msra.mxu0 %v50
    %90 = vmatprep.subr.mxu0 0.0
    %91 = vmatpush1.msra.mxu0 %v51
    %92 = vmatprep.subr.mxu0 0.0
    %93 = vmatpush1.msra.mxu0 %v52
    %94 = vmatprep.subr.mxu0 0.0
    %95 = vmatpush1.msra.mxu0 %v53
    %96 = vmatprep.subr.mxu0 0.0
    %97 = vmatpush1.msra.mxu0 %v54
    %98 = vmatprep.subr.mxu0 0.0
    %99 = vmatpush1.msra.mxu0 %v55
    %100 = vmatprep.subr.mxu0 0.0
    %101 = vmatpush1.msra.mxu0 %v56
    %102 = vmatprep.subr.mxu0 0.0
    %103 = vmatpush1.msra.mxu0 0.0
    %104 = vmatprep.subr.mxu0 0.0
    %105 = vmatpush1.msra.mxu0 0.0
    %106 = vmatprep.subr.mxu0 0.0
    %107 = vmatpush1.msra.mxu0 0.0
    %108 = vmatprep.subr.mxu0 0.0
    %109 = vmatpush1.msra.mxu0 0.0
    %110 = vmatprep.subr.mxu0 0.0
    %111 = vmatpush1.msra.mxu0 0.0
    %112 = vmatprep.subr.mxu0 0.0
    %113 = vmatpush1.msra.mxu0 0.0
    %114 = vmatprep.subr.mxu0 0.0
    %115 = vmatpush1.msra.mxu0 0.0
    %116 = vmatprep.subr.mxu0 0.0
    %117 = vmatpush1.msra.mxu0 0.0
    %118 = vmatprep.subr.mxu0 0.0
    %119 = vmatpush1.msra.mxu0 0.0
    %120 = vmatprep.subr.mxu0 0.0
    %121 = vmatpush1.msra.mxu0 0.0
    %122 = vmatprep.subr.mxu0 0.0
    %123 = vmatpush1.msra.mxu0 0.0
    %124 = vmatprep.subr.mxu0 0.0
    %125 = vmatpush1.msra.mxu0 0.0
    %126 = vmatprep.subr.mxu0 0.0
    %127 = vmatpush1.msra.mxu0 0.0
    %128 = vmatprep.subr.mxu0 0.0
    %129 = vmatpush1.msra.mxu0 0.0
    %130 = vmatprep.subr.mxu0 0.0
    %131 = vmatpush1.msra.mxu0 0.0
    %132 = vmatprep.mubr.f32.mxu0 %v66
    %133 = vmatmul.mubr.f32.gmra.mrb[0].mxu0 %v38
    %v134 = vpop.f32.mrb[0].mxu0
    %v135 = vadd.f32 %v62, %v134
    %v136 = vpop.f32.mrb[0].mxu0
    %137 = vdwg.mxu0
    %vm138 = vcmp.gt.f32.partialorder %v135, 0.0
    %v139 = vmul.f32 %v135, 0.01
    %v140 = vsel %vm138, %v135, %v139
    %v141 = vld [vmem:[%s4] sm:$0xff]
    %v142 = vld [vmem:[%s4 + $0x8] sm:$0xff]
    %v143 = vld [vmem:[%s4 + $0x10] sm:$0xff]
    %v144 = vld [vmem:[%s4 + $0x18] sm:$0xff]
    %v145 = vld [vmem:[%s4 + $0x20] sm:$0xff]
    %v146 = vld [vmem:[%s4 + $0x28] sm:$0xff]
    %v147 = vld [vmem:[%s4 + $0x30] sm:$0xff]
    %v148 = vld [vmem:[%s4 + $0x38] sm:$0xff]
    %v149 = vld [vmem:[%s4 + $0x40] sm:$0xff]
    %v150 = vld [vmem:[%s4 + $0x48] sm:$0xff]
    %v151 = vld [vmem:[%s4 + $0x50] sm:$0xff]
    %v152 = vld [vmem:[%s4 + $0x58] sm:$0xff]
    %v153 = vld [vmem:[%s4 + $0x60] sm:$0xff]
    %v154 = vld [vmem:[%s4 + $0x68] sm:$0xff]
    %v155 = vld [vmem:[%s4 + $0x70] sm:$0xff]
    %v156 = vld [vmem:[%s4 + $0x78] sm:$0xff]
    %v157 = vld [vmem:[%s5] sm:$0x1]
    %v159 = vlaneseq
    %v160 = vshrl.u32 %v159, 7
    %v161 = vsub.s32 0, %v160
    %v162 = vrot.slane %v157, %v161
    %164 = vmatprep.subr.mxu0 0.0
    %165 = vmatpush1.msra.mxu0 %v141
    %166 = vmatprep.subr.mxu0 0.0
    %167 = vmatpush1.msra.mxu0 %v142
    %168 = vmatprep.subr.mxu0 0.0
    %169 = vmatpush1.msra.mxu0 %v143
    %170 = vmatprep.subr.mxu0 0.0
    %171 = vmatpush1.msra.mxu0 %v144
    %172 = vmatprep.subr.mxu0 0.0
    %173 = vmatpush1.msra.mxu0 %v145
    %174 = vmatprep.subr.mxu0 0.0
    %175 = vmatpush1.msra.mxu0 %v146
    %176 = vmatprep.subr.mxu0 0.0
    %177 = vmatpush1.msra.mxu0 %v147
    %178 = vmatprep.subr.mxu0 0.0
    %179 = vmatpush1.msra.mxu0 %v148
    %180 = vmatprep.subr.mxu0 0.0
    %181 = vmatpush1.msra.mxu0 %v149
    %182 = vmatprep.subr.mxu0 0.0
    %183 = vmatpush1.msra.mxu0 %v150
    %184 = vmatprep.subr.mxu0 0.0
    %185 = vmatpush1.msra.mxu0 %v151
    %186 = vmatprep.subr.mxu0 0.0
    %187 = vmatpush1.msra.mxu0 %v152
    %188 = vmatprep.subr.mxu0 0.0
    %189 = vmatpush1.msra.mxu0 %v153
    %190 = vmatprep.subr.mxu0 0.0
    %191 = vmatpush1.msra.mxu0 %v154
    %192 = vmatprep.subr.mxu0 0.0
    %193 = vmatpush1.msra.mxu0 %v155
    %194 = vmatprep.subr.mxu0 0.0
    %195 = vmatpush1.msra.mxu0 %v156
    %196 = vmatprep.subr.mxu0 0.0
    %197 = vmatpush1.msra.mxu0 0.0
    %198 = vmatprep.subr.mxu0 0.0
    %199 = vmatpush1.msra.mxu0 0.0
    %200 = vmatprep.subr.mxu0 0.0
    %201 = vmatpush1.msra.mxu0 0.0
    %202 = vmatprep.subr.mxu0 0.0
    %203 = vmatpush1.msra.mxu0 0.0
    %204 = vmatprep.subr.mxu0 0.0
    %205 = vmatpush1.msra.mxu0 0.0
    %206 = vmatprep.subr.mxu0 0.0
    %207 = vmatpush1.msra.mxu0 0.0
    %208 = vmatprep.subr.mxu0 0.0
    %209 = vmatpush1.msra.mxu0 0.0
    %210 = vmatprep.subr.mxu0 0.0
    %211 = vmatpush1.msra.mxu0 0.0
    %212 = vmatprep.subr.mxu0 0.0
    %213 = vmatpush1.msra.mxu0 0.0
    %214 = vmatprep.subr.mxu0 0.0
    %215 = vmatpush1.msra.mxu0 0.0
    %216 = vmatprep.subr.mxu0 0.0
    %217 = vmatpush1.msra.mxu0 0.0
    %218 = vmatprep.subr.mxu0 0.0
    %219 = vmatpush1.msra.mxu0 0.0
    %220 = vmatprep.subr.mxu0 0.0
    %221 = vmatpush1.msra.mxu0 0.0
    %222 = vmatprep.subr.mxu0 0.0
    %223 = vmatpush1.msra.mxu0 0.0
    %224 = vmatprep.subr.mxu0 0.0
    %225 = vmatpush1.msra.mxu0 0.0
    %226 = vmatprep.subr.mxu0 0.0
    %227 = vmatpush1.msra.mxu0 0.0
    %228 = vmatprep.mubr.f32.mxu0 0.0
    %229 = vmatmul.mubr.f32.gmra.mrb[0].mxu0 %v140
    %v230 = vpop.f32.mrb[0].mxu0
    %v231 = vadd.f32 %v162, %v230
    %v232 = vpop.f32.mrb[0].mxu0
    %233 = vdwg.mxu0
    %vm234 = vcmp.gt.f32.partialorder %v231, 0.0
    %v235 = vmul.f32 %v231, 0.01
    %v236 = vsel %vm234, %v231, %v235
    %237 = vst [vmem:[%s11] sm:$0xff] %v236
    %238 = vrot.lane.b32.xlu0 %v236, 64
    %v239 = vpop.permute.xlu0 %238
    %v240 = vld [vmem:[%s1] sm:$0xff]
    %v241 = vmul.f32 %v239, 0.5
    %v242 = vmul.f32 %v241, 1.442695
    %v243 = vpow.pop %v242
    %v244 = vmul.f32 %v240, %v243
    %v245 = vadd.f32 %v244, %v236
    %v246 = vld [vmem:[%s6] sm:$0xff]
    %v247 = vld [vmem:[%s6 + $0x8] sm:$0xff]
    %v248 = vld [vmem:[%s7] sm:$0x1]
    %v250 = vlaneseq
    %v251 = vshrl.u32 %v250, 7
    %v252 = vsub.s32 0, %v251
    %v253 = vrot.slane %v248, %v252
    %vm255 = vcmask 130048
    %v257 = vsel %vm255, %v245, 0
    %259 = vmatprep.subr.mxu0 0.0
    %260 = vmatpush1.msra.mxu0 %v246
    %261 = vmatprep.subr.mxu0 0.0
    %262 = vmatpush1.msra.mxu0 %v247
    %263 = vmatprep.subr.mxu0 0.0
    %264 = vmatpush1.msra.mxu0 0.0
    %265 = vmatprep.subr.mxu0 0.0
    %266 = vmatpush1.msra.mxu0 0.0
    %267 = vmatprep.subr.mxu0 0.0
    %268 = vmatpush1.msra.mxu0 0.0
    %269 = vmatprep.subr.mxu0 0.0
    %270 = vmatpush1.msra.mxu0 0.0
    %271 = vmatprep.subr.mxu0 0.0
    %272 = vmatpush1.msra.mxu0 0.0
    %273 = vmatprep.subr.mxu0 0.0
    %274 = vmatpush1.msra.mxu0 0.0
    %275 = vmatprep.subr.mxu0 0.0
    %276 = vmatpush1.msra.mxu0 0.0
    %277 = vmatprep.subr.mxu0 0.0
    %278 = vmatpush1.msra.mxu0 0.0
    %279 = vmatprep.subr.mxu0 0.0
    %280 = vmatpush1.msra.mxu0 0.0
    %281 = vmatprep.subr.mxu0 0.0
    %282 = vmatpush1.msra.mxu0 0.0
    %283 = vmatprep.subr.mxu0 0.0
    %284 = vmatpush1.msra.mxu0 0.0
    %285 = vmatprep.subr.mxu0 0.0
    %286 = vmatpush1.msra.mxu0 0.0
    %287 = vmatprep.subr.mxu0 0.0
    %288 = vmatpush1.msra.mxu0 0.0
    %289 = vmatprep.subr.mxu0 0.0
    %290 = vmatpush1.msra.mxu0 0.0
    %291 = vmatprep.subr.mxu0 0.0
    %292 = vmatpush1.msra.mxu0 0.0
    %293 = vmatprep.subr.mxu0 0.0
    %294 = vmatpush1.msra.mxu0 0.0
    %295 = vmatprep.subr.mxu0 0.0
    %296 = vmatpush1.msra.mxu0 0.0
    %297 = vmatprep.subr.mxu0 0.0
    %298 = vmatpush1.msra.mxu0 0.0
    %299 = vmatprep.subr.mxu0 0.0
    %300 = vmatpush1.msra.mxu0 0.0
    %301 = vmatprep.subr.mxu0 0.0
    %302 = vmatpush1.msra.mxu0 0.0
    %303 = vmatprep.subr.mxu0 0.0
    %304 = vmatpush1.msra.mxu0 0.0
    %305 = vmatprep.subr.mxu0 0.0
    %306 = vmatpush1.msra.mxu0 0.0
    %307 = vmatprep.subr.mxu0 0.0
    %308 = vmatpush1.msra.mxu0 0.0
    %309 = vmatprep.subr.mxu0 0.0
    %310 = vmatpush1.msra.mxu0 0.0
    %311 = vmatprep.subr.mxu0 0.0
    %312 = vmatpush1.msra.mxu0 0.0
    %313 = vmatprep.subr.mxu0 0.0
    %314 = vmatpush1.msra.mxu0 0.0
    %315 = vmatprep.subr.mxu0 0.0
    %316 = vmatpush1.msra.mxu0 0.0
    %317 = vmatprep.subr.mxu0 0.0
    %318 = vmatpush1.msra.mxu0 0.0
    %319 = vmatprep.subr.mxu0 0.0
    %320 = vmatpush1.msra.mxu0 0.0
    %321 = vmatprep.subr.mxu0 0.0
    %322 = vmatpush1.msra.mxu0 0.0
    %323 = vmatprep.mubr.f32.mxu0 0.0
    %324 = vmatmul.mubr.f32.gmra.mrb[0].mxu0 %v257
    %v325 = vpop.f32.mrb[0].mxu0
    %v326 = vadd.f32 %v253, %v325
    %v327 = vpop.f32.mrb[0].mxu0
    %328 = vdwg.mxu0
    %vm329 = vcmp.gt.f32.partialorder %v326, 0.0
    %v330 = vmul.f32 %v326, 0.01
    %v331 = vsel %vm329, %v326, %v330
    %v332 = vld [vmem:[%s8] sm:$0xff]
    %v333 = vld [vmem:[%s8 + $0x8] sm:$0xff]
    %v334 = vld [vmem:[%s8 + $0x10] sm:$0xff]
    %v335 = vld [vmem:[%s8 + $0x18] sm:$0xff]
    %v336 = vld [vmem:[%s8 + $0x20] sm:$0xff]
    %v337 = vld [vmem:[%s8 + $0x28] sm:$0xff]
    %v338 = vld [vmem:[%s8 + $0x30] sm:$0xff]
    %v339 = vld [vmem:[%s8 + $0x38] sm:$0xff]
    %v340 = vld [vmem:[%s8 + $0x40] sm:$0xff]
    %v341 = vld [vmem:[%s8 + $0x48] sm:$0xff]
    %v342 = vld [vmem:[%s8 + $0x50] sm:$0xff]
    %v343 = vld [vmem:[%s8 + $0x58] sm:$0xff]
    %v344 = vld [vmem:[%s8 + $0x60] sm:$0xff]
    %v345 = vld [vmem:[%s8 + $0x68] sm:$0xff]
    %v346 = vld [vmem:[%s8 + $0x70] sm:$0xff]
    %v347 = vld [vmem:[%s8 + $0x78] sm:$0xff]
    %v348 = vld [vmem:[%s8 + $0x80] sm:$0xff]
    %v349 = vld [vmem:[%s8 + $0x88] sm:$0xff]
    %v350 = vld [vmem:[%s8 + $0x90] sm:$0xff]
    %v351 = vld [vmem:[%s8 + $0x98] sm:$0xff]
    %v352 = vld [vmem:[%s8 + $0xa0] sm:$0xff]
    %v353 = vld [vmem:[%s8 + $0xa8] sm:$0xff]
    %v354 = vld [vmem:[%s8 + $0xb0] sm:$0xff]
    %v355 = vld [vmem:[%s8 + $0xb8] sm:$0xff]
    %v356 = vld [vmem:[%s8 + $0xc0] sm:$0xff]
    %v357 = vld [vmem:[%s8 + $0xc8] sm:$0xff]
    %v358 = vld [vmem:[%s8 + $0xd0] sm:$0xff]
    %v359 = vld [vmem:[%s8 + $0xd8] sm:$0xff]
    %v360 = vld [vmem:[%s8 + $0xe0] sm:$0xff]
    %v361 = vld [vmem:[%s8 + $0xe8] sm:$0xff]
    %v362 = vld [vmem:[%s8 + $0xf0] sm:$0xff]
    %v363 = vld [vmem:[%s8 + $0xf8] sm:$0xff]
    %v364 = vld [vmem:[%s9] sm:$0x3]
    %v366 = vlaneseq
    %v367 = vshrl.u32 %v366, 7
    %v368 = vsub.s32 0, %v367
    %v369 = vrot.slane %v364, %v368
    %v370 = vlaneseq
    %v371 = vshrl.u32 %v370, 7
    %v372 = vsub.s32 1, %v371
    %v373 = vrot.slane %v364, %v372
    %376 = vmatprep.subr.mxu0 %v333
    %377 = vmatpush1.msra.mxu0 %v332
    %378 = vmatprep.subr.mxu0 %v335
    %379 = vmatpush1.msra.mxu0 %v334
    %380 = vmatprep.subr.mxu0 %v337
    %381 = vmatpush1.msra.mxu0 %v336
    %382 = vmatprep.subr.mxu0 %v339
    %383 = vmatpush1.msra.mxu0 %v338
    %384 = vmatprep.subr.mxu0 %v341
    %385 = vmatpush1.msra.mxu0 %v340
    %386 = vmatprep.subr.mxu0 %v343
    %387 = vmatpush1.msra.mxu0 %v342
    %388 = vmatprep.subr.mxu0 %v345
    %389 = vmatpush1.msra.mxu0 %v344
    %390 = vmatprep.subr.mxu0 %v347
    %391 = vmatpush1.msra.mxu0 %v346
    %392 = vmatprep.subr.mxu0 %v349
    %393 = vmatpush1.msra.mxu0 %v348
    %394 = vmatprep.subr.mxu0 %v351
    %395 = vmatpush1.msra.mxu0 %v350
    %396 = vmatprep.subr.mxu0 %v353
    %397 = vmatpush1.msra.mxu0 %v352
    %398 = vmatprep.subr.mxu0 %v355
    %399 = vmatpush1.msra.mxu0 %v354
    %400 = vmatprep.subr.mxu0 %v357
    %401 = vmatpush1.msra.mxu0 %v356
    %402 = vmatprep.subr.mxu0 %v359
    %403 = vmatpush1.msra.mxu0 %v358
    %404 = vmatprep.subr.mxu0 %v361
    %405 = vmatpush1.msra.mxu0 %v360
    %406 = vmatprep.subr.mxu0 %v363
    %407 = vmatpush1.msra.mxu0 %v362
    %408 = vmatprep.subr.mxu0 0.0
    %409 = vmatpush1.msra.mxu0 0.0
    %410 = vmatprep.subr.mxu0 0.0
    %411 = vmatpush1.msra.mxu0 0.0
    %412 = vmatprep.subr.mxu0 0.0
    %413 = vmatpush1.msra.mxu0 0.0
    %414 = vmatprep.subr.mxu0 0.0
    %415 = vmatpush1.msra.mxu0 0.0
    %416 = vmatprep.subr.mxu0 0.0
    %417 = vmatpush1.msra.mxu0 0.0
    %418 = vmatprep.subr.mxu0 0.0
    %419 = vmatpush1.msra.mxu0 0.0
    %420 = vmatprep.subr.mxu0 0.0
    %421 = vmatpush1.msra.mxu0 0.0
    %422 = vmatprep.subr.mxu0 0.0
    %423 = vmatpush1.msra.mxu0 0.0
    %424 = vmatprep.subr.mxu0 0.0
    %425 = vmatpush1.msra.mxu0 0.0
    %426 = vmatprep.subr.mxu0 0.0
    %427 = vmatpush1.msra.mxu0 0.0
    %428 = vmatprep.subr.mxu0 0.0
    %429 = vmatpush1.msra.mxu0 0.0
    %430 = vmatprep.subr.mxu0 0.0
    %431 = vmatpush1.msra.mxu0 0.0
    %432 = vmatprep.subr.mxu0 0.0
    %433 = vmatpush1.msra.mxu0 0.0
    %434 = vmatprep.subr.mxu0 0.0
    %435 = vmatpush1.msra.mxu0 0.0
    %436 = vmatprep.subr.mxu0 0.0
    %437 = vmatpush1.msra.mxu0 0.0
    %438 = vmatprep.subr.mxu0 0.0
    %439 = vmatpush1.msra.mxu0 0.0
    %440 = vmatprep.mubr.f32.mxu0 0.0
    %441 = vmatmul.mubr.f32.gmra.mrb[0].mxu0 %v331
    %v442 = vpop.f32.mrb[0].mxu0
    %v443 = vadd.f32 %v369, %v442
    %v444 = vpop.f32.mrb[0].mxu0
    %v445 = vadd.f32 %v373, %v444
    %446 = vdwg.mxu0
    %v447 = vxor.u32 %v443, 2147483648
    %v448 = vxor.u32 %v445, 2147483648
    %v449 = vmul.f32 %v447, 1.442695
    %v450 = vpow.pop %v449
    %v451 = vmul.f32 %v448, 1.442695
    %v452 = vpow.pop %v451
    %v453 = vadd.f32 %v450, 1.0
    %v454 = vadd.f32 %v452, 1.0
    %v455 = vrcp.pop %v453
    %v456 = vmul.f32 1.0, %v455
    %v457 = vrcp.pop %v454
    %v458 = vmul.f32 1.0, %v457
    %459 = vst [vmem:[#allocation2] sm:$0xff] %v456
    %460 = vst.msk [vmem:[#allocation2 + $0x8] sm:$0xff] %vm64, %v458
    // Predicated region
    $region42: #{landmark_vae_forward.1} parent=1 // pred_check
      _
    $region43: #{landmark_vae_forward.1} parent=1 // pred_check_branch
      %462 = sbr.rel (0) target = $region45
    $region44: #{landmark_vae_forward.1} parent=1 // pred_region
      %s464 = ssub.s32 256, 256
      %465 = vsyncadd [#allocation3], %s464
      %s467 = sshll.u32 [#allocation2], 4
      %s468 = int_to_ptr.vmem [resolvable:$true] %s467
      %470 = dma.vmem_to_hbm [thread:$0]  %s468, 256, %s10, [#allocation3]
    $region45: #{landmark_vae_forward.1} parent=1 // pred_fallthru
      _
    // Predicated region
    $region46: #{landmark_vae_forward.1} parent=1 // pred_check
      _
    $region47: #{landmark_vae_forward.1} parent=1 // pred_check_branch
      %472 = sbr.rel (0) target = $region49
    $region48: #{landmark_vae_forward.1} parent=1 // pred_region
      _
    $region49: #{landmark_vae_forward.1} parent=1 // pred_fallthru
      _
    // Predicated region
    $region50: #{landmark_vae_forward.1} parent=1 // pred_check
      _
    $region51: #{landmark_vae_forward.1} parent=1 // pred_check_branch
      %474 = sbr.rel (0) target = $region53
    $region52: #{landmark_vae_forward.1} parent=1 // pred_region
      %475 = dma.done [#allocation3], 256
    $region53: #{landmark_vae_forward.1} parent=1 // pred_fallthru
      _
    // Predicated region
    $region54: #{landmark_vae_forward.1} parent=1 // pred_check
      _
    $region55: #{landmark_vae_forward.1} parent=1 // pred_check_branch
      %477 = sbr.rel (0) target = $region57
    $region56: #{landmark_vae_forward.1} parent=1 // pred_region
      _
    $region57: #{landmark_vae_forward.1} parent=1 // pred_fallthru
      _
    %478 = vsyncpa [#allocation3], 1

</llo_original>
